<compile_context>
chip_gen: v6e
topology: v6e:2x2x1
jax: 0.10.0
libtpu: 0.0.40
codegen_flags: <defaults>
</compile_context>

<pallas_src>
import functools

import jax
import jax.numpy as jnp
from jax.experimental import pallas as pl
from jax.experimental.pallas import tpu as pltpu


def _round_up(n, m):
    return ((n + m - 1) // m) * m


def _largest_divisor_tile(n, candidates):
    for c in candidates:
        if c <= n and n % c == 0:
            return c
    return n


def _vmem_capacity_bytes():
    try:
        info = pltpu.get_tpu_info()
        cap = getattr(info, "vmem_capacity_bytes", None)
        if cap:
            return int(cap)
    except Exception:
        pass
    return 64 << 20  # conservative default (v7x per-TensorCore VMEM)


def aft_full_kernel(xf_ref, ew_ref,
                    wq_ref, bq_ref,
                    wkv_ref, bkv_ref,
                    wp_ref, bp_ref,
                    o_ref,
                    ekv_ref,
                    *, hp, kv_chunk):
    """One grid step = one (tq, Dp) row tile of one batch element.

    xf_ref : (T,  Dp)   full sequence of x for this batch element (same block for all row tiles)
    ew_ref : (tq, T)    precomputed exp(wbias - rowmax) row tile (bf16)
    wq/bq  : (Dp, Hp) / (1, Hp)
    wkv/bkv: (Dp, 2Hp) / (1, 2Hp)     fused [Wk | Wv]
    wp/bp  : (Hp, Dp) / (1, Dp)
    o_ref  : (tq, Dp)
    ekv_ref: (T, 2Hp)   bf16 VMEM scratch holding [exp(K)*V | exp(K)] for this batch element
    """
    t = pl.program_id(1)
    tq = ew_ref.shape[0]
    seq = xf_ref.shape[0]

    # --- once per batch element: fused K/V projection of the FULL sequence,
    #     chunked over rows so the f32 transients stay small (v7x VMEM budget).
    @pl.when(t == 0)
    def _():
        nchunks = seq // kv_chunk

        def body(c, carry):
            r = pl.multiple_of(c * kv_chunk, kv_chunk)
            xc = xf_ref[pl.ds(r, kv_chunk), :]
            kv = jnp.dot(xc, wkv_ref[...],
                         preferred_element_type=jnp.float32) + bkv_ref[...]   # (chunk, 2Hp)
            ek = jnp.exp(kv[:, :hp])          # matches reference: no K stabilization
            ekv_ref[pl.ds(r, kv_chunk), :hp] = (ek * kv[:, hp:]).astype(ekv_ref.dtype)
            ekv_ref[pl.ds(r, kv_chunk), hp:] = ek.astype(ekv_ref.dtype)
            return carry

        jax.lax.fori_loop(0, nchunks, body, 0)

    # --- per row tile: q comes from the resident full-sequence block (x streamed once)
    row0 = pl.multiple_of(t * tq, tq)
    xq = xf_ref[pl.ds(row0, tq), :]                                            # (tq, Dp)
    q = jnp.dot(xq, wq_ref[...], preferred_element_type=jnp.float32) + bq_ref[...]
    q_sig = jax.nn.sigmoid(q)                                                  # (tq, Hp)

    # Single fused matmul produces [num | den] in one MXU pass over the big operand.
    nd = jnp.dot(ew_ref[...], ekv_ref[...], preferred_element_type=jnp.float32)  # (tq, 2Hp)
    num = nd[:, :hp]
    den = nd[:, hp:]
    y = q_sig * num * pl.reciprocal(den, approx=True)                          # (tq, Hp)

    out = jnp.dot(y.astype(wp_ref.dtype), wp_ref[...],
                  preferred_element_type=jnp.float32) + bp_ref[...]            # (tq, Dp)
    o_ref[...] = out.astype(o_ref.dtype)


def aft_full(x, wbias, wq, bq, wk, bk, wv, bv, wp, bp,
             *, mxu_dtype=jnp.bfloat16, tq=None):
    """x: (B, T, D). wbias: (max_seqlen, max_seqlen). Linear weights are (in, out).

    mxu_dtype: dtype fed to the MXU for x / weights (bf16 default — fast path on
               v5e/v6e/v7x); accumulation is always float32.  ew and the ekv
               scratch are stored bf16 unconditionally.
    tq:        query-row tile size (must divide T); auto-selected (VMEM aware) if None.
    """
    B, T, D = x.shape
    H = wq.shape[1]
    out_dtype = x.dtype

    # ---- lane-dense padding of the hidden / embedding dims -------------------
    Dp = _round_up(D, 128)
    Hp = _round_up(H, 128)

    def pad2(a, r, c):
        return jnp.pad(a, ((0, r - a.shape[0]), (0, c - a.shape[1])))

    def pad1(a, n):
        return jnp.pad(a, (0, n - a.shape[0]))

    x_p = jnp.pad(x, ((0, 0), (0, 0), (0, Dp - D))).astype(mxu_dtype)

    wq_p = pad2(wq, Dp, Hp).astype(mxu_dtype)
    bq_p = pad1(bq, Hp).reshape(1, Hp).astype(jnp.float32)
    wkv_p = jnp.concatenate([pad2(wk, Dp, Hp), pad2(wv, Dp, Hp)],
                            axis=1).astype(mxu_dtype)                    # (Dp, 2Hp)
    bkv_p = jnp.concatenate([pad1(bk, Hp), pad1(bv, Hp)]
                            ).reshape(1, 2 * Hp).astype(jnp.float32)
    wp_p = pad2(wp, Hp, Dp).astype(mxu_dtype)
    bp_p = pad1(bp, Dp).reshape(1, Dp).astype(jnp.float32)

    # ---- hoisted, row-max-stabilized exp(position bias), stored bf16 ---------
    # (values in (0, 1]; the per-row factor cancels exactly between num and den)
    wb = wbias[:T, :T].astype(jnp.float32)
    ew = jnp.exp(wb - jnp.max(wb, axis=1, keepdims=True)).astype(jnp.bfloat16)

    # ---- generation-aware tile selection --------------------------------------
    kv_chunk = _largest_divisor_tile(T, (512, 256, 128, 64, 32, 16, 8))

    mxu_b = jnp.dtype(mxu_dtype).itemsize
    out_b = jnp.dtype(out_dtype).itemsize

    vmem_cap = _vmem_capacity_bytes()
    budget = int(vmem_cap * (0.6 if vmem_cap <= (64 << 20) else 0.75))

    fixed_bytes = (
        2 * T * Dp * mxu_b                                     # xf block (double buffered)
        + T * 2 * Hp * 2                                       # ekv scratch (bf16)
        + 2 * (wq_p.size + wkv_p.size + wp_p.size) * mxu_b     # weights (double buffered)
        + 2 * (bq_p.size + bkv_p.size + bp_p.size) * 4         # biases (double buffered)
        + 3 * kv_chunk * 2 * Hp * 4                            # t==0 f32 transients
    )
    per_tq_bytes = (
        2 * T * 2                                              # ew row tile (bf16, x2 buffers)
        + 2 * Dp * out_b                                       # output tile (x2 buffers)
        + 4 * (Dp + 4 * Hp)                                    # f32 in-kernel temporaries
    )

    if tq is None:
        cands = [c for c in (512, 256, 128, 64, 32, 16, 8) if c <= T and T % c == 0]
        if not cands:
            # TODO(synk): T with no small divisor (e.g. prime) keeps the whole
            # (T, T) ew block resident; pad T upstream for such shapes.
            cands = [T]
        tq = cands[-1]                      # smallest fallback if nothing fits the budget
        for c in cands:                     # descending: prefer 512/256 (v6e/v7x MXU tile)
            if fixed_bytes + c * per_tq_bytes <= budget:
                tq = c
                break
    assert T % tq == 0, "tq must divide T"

    footprint = fixed_bytes + tq * per_tq_bytes
    vmem_limit = max(32 << 20, min(int(0.9 * vmem_cap), footprint + (24 << 20)))

    grid = (B, T // tq)
    fixed = lambda b, t: (0, 0)

    kernel = functools.partial(aft_full_kernel, hp=Hp, kv_chunk=kv_chunk)

    # NOTE: the row-tile axis must stay "arbitrary" because the per-batch
    # [exp(K)*V | exp(K)] scratch is filled at t == 0 and reused by later tiles;
    # megacore parallelism comes from the batch axis.  (Weights and the full-x
    # block have constant block indices along t, so they are not re-fetched.)
    out_padded = pl.pallas_call(
        kernel,
        out_shape=jax.ShapeDtypeStruct((B, T, Dp), out_dtype),
        grid_spec=pltpu.PrefetchScalarGridSpec(
            num_scalar_prefetch=0,
            grid=grid,
            in_specs=[
                pl.BlockSpec((None, T, Dp), lambda b, t: (b, 0, 0)),      # x (full sequence)
                pl.BlockSpec((tq, T), lambda b, t: (t, 0)),               # exp(wbias) row tile
                pl.BlockSpec((Dp, Hp), fixed), pl.BlockSpec((1, Hp), fixed),          # to_q
                pl.BlockSpec((Dp, 2 * Hp), fixed), pl.BlockSpec((1, 2 * Hp), fixed),  # [to_k|to_v]
                pl.BlockSpec((Hp, Dp), fixed), pl.BlockSpec((1, Dp), fixed),          # project
            ],
            out_specs=pl.BlockSpec((None, tq, Dp), lambda b, t: (b, t, 0)),
            scratch_shapes=[pltpu.VMEM((T, 2 * Hp), jnp.bfloat16)],
        ),
        compiler_params=pltpu.CompilerParams(
            dimension_semantics=("parallel", "arbitrary"),
            vmem_limit_bytes=int(vmem_limit),
        ),
    )(x_p, ew, wq_p, bq_p, wkv_p, bkv_p, wp_p, bp_p)

    if D != Dp:
        return out_padded[:, :, :D]
    return out_padded


def aft_full_ref(x, wbias, wq, bq, wk, bk, wv, bv, wp, bp):
    """Pure-JAX reference mirroring the PyTorch forward exactly (no stabilization)."""
    B, T, D = x.shape
    Q = x @ wq + bq
    K = x @ wk + bk
    V = x @ wv + bv
    wb = wbias[:T, :T][None, :, :]
    Q_sig = jax.nn.sigmoid(Q)
    temp = jnp.exp(wb) @ (jnp.exp(K) * V)
    weighted = temp / (jnp.exp(wb) @ jnp.exp(K))
    Yt = Q_sig * weighted
    return Yt @ wp + bp


if __name__ == "__main__":
    # Small shapes consistent with the module
    B, T, D, H = 2, 8, 32, 64
    max_seqlen = 16

    key = jax.random.PRNGKey(0)
    keys = jax.random.split(key, 10)

    x = jax.random.normal(keys[0], (B, T, D), dtype=jnp.float32)

    def lin_init(kw, kb, fan_in, fan_out):
        bound = 1.0 / jnp.sqrt(fan_in)
        w = jax.random.uniform(kw, (fan_in, fan_out), minval=-bound, maxval=bound,
                               dtype=jnp.float32)
        b = jax.random.uniform(kb, (fan_out,), minval=-bound, maxval=bound,
                               dtype=jnp.float32)
        return w, b

    wq, bq = lin_init(keys[1], keys[2], D, H)
    wk, bk = lin_init(keys[3], keys[4], D, H)
    wv, bv = lin_init(keys[5], keys[6], D, H)
    wp, bp = lin_init(keys[7], keys[8], H, D)

    xav = jnp.sqrt(6.0 / (max_seqlen + max_seqlen))
    wbias = jax.random.uniform(keys[9], (max_seqlen, max_seqlen),
                               minval=-xav, maxval=xav, dtype=jnp.float32)

    ref = aft_full_ref(x, wbias, wq, bq, wk, bk, wv, bv, wp, bp)

    # Default path: bf16 MXU inputs, f32 accumulation (fast path on v5e/v6e/v7x).
    out = aft_full(x, wbias, wq, bq, wk, bk, wv, bv, wp, bp)
    out = jax.block_until_ready(out)
    assert out.shape == (B, T, D)
    assert jnp.allclose(out, ref, atol=5e-2, rtol=5e-2), "bf16 kernel mismatch vs reference"

    # f32 MXU inputs (ew / ekv remain bf16 storage by design).
    out_f32 = aft_full(x, wbias, wq, bq, wk, bk, wv, bv, wp, bp,
                       mxu_dtype=jnp.float32)
    out_f32 = jax.block_until_ready(out_f32)
    assert jnp.allclose(out_f32, ref, atol=3e-2, rtol=3e-2), "f32 kernel mismatch vs reference"

    print("KERNEL_OK")
</pallas_src>

<mosaic_0001>
module attributes {stable_mosaic.version = 11 : i64} {
  func.func @aft_full_kernel(%arg0: i32, %arg1: i32, %arg2: memref<1x8x128xbf16, #tpu.memory_space<vmem>>, %arg3: memref<8x8xbf16, #tpu.memory_space<vmem>>, %arg4: memref<128x128xbf16, #tpu.memory_space<vmem>>, %arg5: memref<1x128xf32, #tpu.memory_space<vmem>>, %arg6: memref<128x256xbf16, #tpu.memory_space<vmem>>, %arg7: memref<1x256xf32, #tpu.memory_space<vmem>>, %arg8: memref<128x128xbf16, #tpu.memory_space<vmem>>, %arg9: memref<1x128xf32, #tpu.memory_space<vmem>>, %arg10: memref<1x8x128xf32, #tpu.memory_space<vmem>>, %arg11: memref<8x256xbf16, #tpu.memory_space<vmem>>) attributes {dimension_semantics = [#tpu.dimension_semantics<parallel>, #tpu.dimension_semantics<arbitrary>], iteration_bounds = array<i64: 2, 1>, scalar_prefetch = 0 : i64, scratch_operands = 1 : i64, tpu.core_type = #tpu.core_type<tc>, window_params = [{transform_indices = @transform_0, window_bounds = array<i64: 1, 8, 128>}, {transform_indices = @transform_1, window_bounds = array<i64: 8, 8>}, {pipeline_mode = #tpu.pipeline_mode<synchronous>, transform_indices = @transform_2, window_bounds = array<i64: 128, 128>}, {pipeline_mode = #tpu.pipeline_mode<synchronous>, transform_indices = @transform_3, window_bounds = array<i64: 1, 128>}, {pipeline_mode = #tpu.pipeline_mode<synchronous>, transform_indices = @transform_4, window_bounds = array<i64: 128, 256>}, {pipeline_mode = #tpu.pipeline_mode<synchronous>, transform_indices = @transform_5, window_bounds = array<i64: 1, 256>}, {pipeline_mode = #tpu.pipeline_mode<synchronous>, transform_indices = @transform_6, window_bounds = array<i64: 128, 128>}, {pipeline_mode = #tpu.pipeline_mode<synchronous>, transform_indices = @transform_7, window_bounds = array<i64: 1, 128>}, {transform_indices = @transform_8, window_bounds = array<i64: 1, 8, 128>}]} {
    %c0_i32 = arith.constant 0 : i32
    %0 = arith.cmpi eq, %arg1, %c0_i32 : i32
    %1 = arith.extui %0 : i1 to i32
    %c0_i32_0 = arith.constant 0 : i32
    %2 = arith.cmpi ne, %1, %c0_i32_0 : i32
    scf.if %2 {
      %c0_i32_20 = arith.constant 0 : i32
      %c8_i32_21 = arith.constant 8 : i32
      %35 = arith.muli %c0_i32_20, %c8_i32_21 : i32
      %36 = tpu.assume_multiple %35, 8 : i32
      %c0_22 = arith.constant 0 : index
      %37 = arith.index_cast %36 : i32 to index
      %c0_23 = arith.constant 0 : index
      %38 = vector.load %arg2[%c0_22, %37, %c0_23] : memref<1x8x128xbf16, #tpu.memory_space<vmem>>, vector<1x8x128xbf16>
      %39 = vector.shape_cast %38 : vector<1x8x128xbf16> to vector<8x128xbf16>
      %c0_24 = arith.constant 0 : index
      %c0_25 = arith.constant 0 : index
      %40 = vector.load %arg6[%c0_24, %c0_25] : memref<128x256xbf16, #tpu.memory_space<vmem>>, vector<128x256xbf16>
      %cst_26 = arith.constant dense<0.000000e+00> : vector<8x256xf32>
      %41 = tpu.matmul %39, %40, %cst_26 {dimension_numbers = #tpu.dot_dimension_numbers<[1], [0], [0], [1], [0, 0, 1, 1], [], []>} : vector<8x128xbf16>, vector<128x256xbf16>, vector<8x256xf32> -> vector<8x256xf32>
      %c0_27 = arith.constant 0 : index
      %c0_28 = arith.constant 0 : index
      %42 = vector.load %arg7[%c0_27, %c0_28] : memref<1x256xf32, #tpu.memory_space<vmem>>, vector<1x256xf32>
      %43 = vector.broadcast %42 : vector<1x256xf32> to vector<8x256xf32>
      %44 = arith.addf %41, %43 : vector<8x256xf32>
      %45 = vector.extract_strided_slice %44 {offsets = [0, 0], sizes = [8, 128], strides = [1, 1]} : vector<8x256xf32> to vector<8x128xf32>
      %46 = math.exp %45 : vector<8x128xf32>
      %47 = vector.extract_strided_slice %44 {offsets = [0, 128], sizes = [8, 128], strides = [1, 1]} : vector<8x256xf32> to vector<8x128xf32>
      %48 = arith.mulf %46, %47 : vector<8x128xf32>
      %49 = arith.truncf %48 : vector<8x128xf32> to vector<8x128xbf16>
      %50 = arith.index_cast %36 : i32 to index
      %c0_29 = arith.constant 0 : index
      %51 = vector.load %arg11[%50, %c0_29] : memref<8x256xbf16, #tpu.memory_space<vmem>>, vector<8x128xbf16>
      tpu.vector_store %arg11[%50, %c0_29], %49 {strides = array<i32>} : memref<8x256xbf16, #tpu.memory_space<vmem>>, vector<8x128xbf16>,
      %52 = arith.truncf %46 : vector<8x128xf32> to vector<8x128xbf16>
      %53 = arith.index_cast %36 : i32 to index
      %c128 = arith.constant 128 : index
      %54 = vector.load %arg11[%53, %c128] : memref<8x256xbf16, #tpu.memory_space<vmem>>, vector<8x128xbf16>
      tpu.vector_store %arg11[%53, %c128], %52 {strides = array<i32>} : memref<8x256xbf16, #tpu.memory_space<vmem>>, vector<8x128xbf16>,
      %c1_i32 = arith.constant 1 : i32
    } else {
    }
    %c8_i32 = arith.constant 8 : i32
    %3 = arith.muli %arg1, %c8_i32 : i32
    %4 = tpu.assume_multiple %3, 8 : i32
    %c0 = arith.constant 0 : index
    %5 = arith.index_cast %4 : i32 to index
    %c0_1 = arith.constant 0 : index
    %6 = vector.load %arg2[%c0, %5, %c0_1] : memref<1x8x128xbf16, #tpu.memory_space<vmem>>, vector<1x8x128xbf16>
    %7 = vector.shape_cast %6 : vector<1x8x128xbf16> to vector<8x128xbf16>
    %c0_2 = arith.constant 0 : index
    %c0_3 = arith.constant 0 : index
    %8 = vector.load %arg4[%c0_2, %c0_3] : memref<128x128xbf16, #tpu.memory_space<vmem>>, vector<128x128xbf16>
    %cst = arith.constant dense<0.000000e+00> : vector<8x128xf32>
    %9 = tpu.matmul %7, %8, %cst {dimension_numbers = #tpu.dot_dimension_numbers<[1], [0], [0], [1], [0, 0, 1, 1], [], []>} : vector<8x128xbf16>, vector<128x128xbf16>, vector<8x128xf32> -> vector<8x128xf32>
    %c0_4 = arith.constant 0 : index
    %c0_5 = arith.constant 0 : index
    %10 = vector.load %arg5[%c0_4, %c0_5] : memref<1x128xf32, #tpu.memory_space<vmem>>, vector<1x128xf32>
    %11 = vector.broadcast %10 : vector<1x128xf32> to vector<8x128xf32>
    %12 = arith.addf %9, %11 : vector<8x128xf32>
    %13 = arith.negf %12 : vector<8x128xf32>
    %14 = math.exp %13 : vector<8x128xf32>
    %cst_6 = arith.constant 1.000000e+00 : f32
    %15 = vector.broadcast %cst_6 : f32 to vector<8x128xf32>
    %16 = arith.addf %15, %14 : vector<8x128xf32>
    %17 = arith.divf %15, %16 : vector<8x128xf32>
    %c0_7 = arith.constant 0 : index
    %c0_8 = arith.constant 0 : index
    %18 = vector.load %arg3[%c0_7, %c0_8] : memref<8x8xbf16, #tpu.memory_space<vmem>>, vector<8x8xbf16>
    %c0_9 = arith.constant 0 : index
    %c0_10 = arith.constant 0 : index
    %19 = vector.load %arg11[%c0_9, %c0_10] : memref<8x256xbf16, #tpu.memory_space<vmem>>, vector<8x256xbf16>
    %cst_11 = arith.constant dense<0.000000e+00> : vector<8x256xf32>
    %20 = tpu.matmul %18, %19, %cst_11 {dimension_numbers = #tpu.dot_dimension_numbers<[1], [0], [0], [1], [0, 0, 1, 1], [], []>} : vector<8x8xbf16>, vector<8x256xbf16>, vector<8x256xf32> -> vector<8x256xf32>
    %21 = vector.extract_strided_slice %20 {offsets = [0, 0], sizes = [8, 128], strides = [1, 1]} : vector<8x256xf32> to vector<8x128xf32>
    %22 = vector.extract_strided_slice %20 {offsets = [0, 128], sizes = [8, 128], strides = [1, 1]} : vector<8x256xf32> to vector<8x128xf32>
    %23 = arith.mulf %17, %21 : vector<8x128xf32>
    %24 = tpu.reciprocal %22 {approx = true} : vector<8x128xf32> -> vector<8x128xf32>
    %25 = arith.mulf %23, %24 : vector<8x128xf32>
    %26 = arith.truncf %25 : vector<8x128xf32> to vector<8x128xbf16>
    %c0_12 = arith.constant 0 : index
    %c0_13 = arith.constant 0 : index
    %27 = vector.load %arg8[%c0_12, %c0_13] : memref<128x128xbf16, #tpu.memory_space<vmem>>, vector<128x128xbf16>
    %cst_14 = arith.constant dense<0.000000e+00> : vector<8x128xf32>
    %28 = tpu.matmul %26, %27, %cst_14 {dimension_numbers = #tpu.dot_dimension_numbers<[1], [0], [0], [1], [0, 0, 1, 1], [], []>} : vector<8x128xbf16>, vector<128x128xbf16>, vector<8x128xf32> -> vector<8x128xf32>
    %c0_15 = arith.constant 0 : index
    %c0_16 = arith.constant 0 : index
    %29 = vector.load %arg9[%c0_15, %c0_16] : memref<1x128xf32, #tpu.memory_space<vmem>>, vector<1x128xf32>
    %30 = vector.broadcast %29 : vector<1x128xf32> to vector<8x128xf32>
    %31 = arith.addf %28, %30 : vector<8x128xf32>
    %c0_17 = arith.constant 0 : index
    %c0_18 = arith.constant 0 : index
    %c0_19 = arith.constant 0 : index
    %32 = vector.load %arg10[%c0_17, %c0_18, %c0_19] : memref<1x8x128xf32, #tpu.memory_space<vmem>>, vector<1x8x128xf32>
    %33 = vector.shape_cast %32 : vector<1x8x128xf32> to vector<8x128xf32>
    %34 = vector.shape_cast %31 : vector<8x128xf32> to vector<1x8x128xf32>
    tpu.vector_store %arg10[%c0_17, %c0_18, %c0_19], %34 {strides = array<i32>} : memref<1x8x128xf32, #tpu.memory_space<vmem>>, vector<1x8x128xf32>,
    return
  }
  func.func @transform_0(%arg0: i32, %arg1: i32) -> (i32, i32, i32) {
    %c0_i32 = arith.constant 0 : i32
    %c0_i32_0 = arith.constant 0 : i32
    %c0_i32_1 = arith.constant 0 : i32
    return %arg0, %c0_i32, %c0_i32_0 : i32, i32, i32
  }
  func.func @transform_1(%arg0: i32, %arg1: i32) -> (i32, i32) {
    %c0_i32 = arith.constant 0 : i32
    %c0_i32_0 = arith.constant 0 : i32
    return %arg1, %c0_i32 : i32, i32
  }
  func.func @transform_2(%arg0: i32, %arg1: i32) -> (i32, i32) {
    %c0_i32 = arith.constant 0 : i32
    %c0_i32_0 = arith.constant 0 : i32
    %c0_i32_1 = arith.constant 0 : i32
    return %c0_i32, %c0_i32_0 : i32, i32
  }
  func.func @transform_3(%arg0: i32, %arg1: i32) -> (i32, i32) {
    %c0_i32 = arith.constant 0 : i32
    %c0_i32_0 = arith.constant 0 : i32
    %c0_i32_1 = arith.constant 0 : i32
    return %c0_i32, %c0_i32_0 : i32, i32
  }
  func.func @transform_4(%arg0: i32, %arg1: i32) -> (i32, i32) {
    %c0_i32 = arith.constant 0 : i32
    %c0_i32_0 = arith.constant 0 : i32
    %c0_i32_1 = arith.constant 0 : i32
    return %c0_i32, %c0_i32_0 : i32, i32
  }
  func.func @transform_5(%arg0: i32, %arg1: i32) -> (i32, i32) {
    %c0_i32 = arith.constant 0 : i32
    %c0_i32_0 = arith.constant 0 : i32
    %c0_i32_1 = arith.constant 0 : i32
    return %c0_i32, %c0_i32_0 : i32, i32
  }
  func.func @transform_6(%arg0: i32, %arg1: i32) -> (i32, i32) {
    %c0_i32 = arith.constant 0 : i32
    %c0_i32_0 = arith.constant 0 : i32
    %c0_i32_1 = arith.constant 0 : i32
    return %c0_i32, %c0_i32_0 : i32, i32
  }
  func.func @transform_7(%arg0: i32, %arg1: i32) -> (i32, i32) {
    %c0_i32 = arith.constant 0 : i32
    %c0_i32_0 = arith.constant 0 : i32
    %c0_i32_1 = arith.constant 0 : i32
    return %c0_i32, %c0_i32_0 : i32, i32
  }
  func.func @transform_8(%arg0: i32, %arg1: i32) -> (i32, i32, i32) {
    %c0_i32 = arith.constant 0 : i32
    %c0_i32_0 = arith.constant 0 : i32
    return %arg0, %arg1, %c0_i32 : i32, i32, i32
  }
}

</mosaic_0001>

<llo_original>
// kernel: tpu_custom_call.1
$region0: #{tpu_custom_call.1}
  #allocation0 [shape = 'u32[]', space=smem, size = 0x4, offset = 0x4, fixed_abs, tag = 'smem constant byte address 0x4 - core index']
  #allocation1 [shape = 'u32[144,128]{1,0:T(1,128)}', space=vmem, size = 0x12000, scoped, tag = 'internal scratch']
  #allocation2 [shape = 'bf16[8,256]{1,0:T(8,128)(2,1)}', space=vmem, size = 0x1000, scoped, tag = 'scratch operand']
  %s0 = inlined_call_operand.hbm [shape: bf16[2,8,128], index: 0, kind: input, shape index: {}]
  %s1 = inlined_call_operand.hbm [shape: bf16[8,8], index: 1, kind: input, shape index: {}]
  %s2 = inlined_call_operand.hbm [shape: bf16[128,128], index: 2, kind: input, shape index: {}]
  %s3 = inlined_call_operand.vmem [shape: f32[1,128], index: 3, kind: input, shape index: {}]
  %s4 = inlined_call_operand.hbm [shape: bf16[128,256], index: 4, kind: input, shape index: {}]
  %s5 = inlined_call_operand.vmem [shape: f32[1,256], index: 5, kind: input, shape index: {}]
  %s6 = inlined_call_operand.hbm [shape: bf16[128,128], index: 6, kind: input, shape index: {}]
  %s7 = inlined_call_operand.vmem [shape: f32[1,128], index: 7, kind: input, shape index: {}]
  %s8 = inlined_call_operand.hbm [shape: f32[2,8,128], index: 8, kind: output, shape index: {}]
  %s9 = sld [smem:[#allocation0]]
  $region89: #{tpu_custom_call.1} parent=0
    _
  %s11 = ssub.s32 1, %s9
  %s12 = scalar_select 0, %s11, %s9
  $region1: #{tpu_custom_call.1} parent=0
    #allocation3 [shape = 'u8[4096]{0}', space=vmem, size = 0x1000, scoped, tag = 'input window, operand 0']
    #allocation4 [shape = 's32[2]{0}', space=sflag, size = 0x8, scoped, tag = 'scoped memory for tpu_custom_call.1']
    #allocation5 [shape = 's32[2]{0}', space=sflag, size = 0x8, scoped, tag = 'scoped memory for tpu_custom_call.1']
    #allocation6 [shape = 'u8[2048]{0}', space=vmem, size = 0x800, scoped, tag = 'input window, operand 1, single buffered']
    #allocation7 [shape = 's32[1]{0}', space=sflag, size = 0x4, scoped, tag = 'scoped memory for tpu_custom_call.1']
    #allocation8 [shape = 'u8[32768]{0}', space=vmem, size = 0x8000, scoped, tag = 'input window, operand 2, single buffered']
    #allocation9 [shape = 'u8[65536]{0}', space=vmem, size = 0x10000, scoped, tag = 'input window, operand 4, single buffered']
    #allocation10 [shape = 's32[1]{0}', space=sflag, size = 0x4, scoped, tag = 'scoped memory for tpu_custom_call.1']
    #allocation11 [shape = 'u8[32768]{0}', space=vmem, size = 0x8000, scoped, tag = 'input window, operand 6, single buffered']
    #allocation12 [shape = 'u8[8192]{0}', space=vmem, size = 0x2000, scoped, tag = 'output window, operand 0']
    %13 = vsyncpa [#allocation4], 0
    %s14 = scalar_lea.sflag [#allocation4], 1
    %15 = vsyncpa %s14, 0
    %16 = vsyncpa [#allocation7], 0
    %17 = vsyncpa [#allocation10], 0
    %18 = vsyncpa [#allocation5], 0
    %s19 = scalar_lea.sflag [#allocation5], 1
    %20 = vsyncpa %s19, 0
    loop: start=0, step=1, limit=4
    $region2: #{tpu_custom_call.1} parent=1 // loop_pre_header
      _
    $region3: #{tpu_custom_call.1} parent=1 // loop_header
      %s22 = sphi 0, %s26
      %p23 = scmp.ge.s32.totalorder %s22, 4
      %s29 = sphi 0, %s41
      %s30 = sphi 0, %s37
      %s31 = sphi 0, %s29
      %s32 = sphi 0, %s30
      %s33 = sphi 0, %s31
      %s34 = sphi 0, %s32
      %s44 = sphi 0, %s46
      %s47 = sphi 0, %s44
      %s48 = sphi 0, %s47
      %s64 = sphi 0, %s48
      %s70 = sphi 0, %s72
      %s73 = sphi 0, %s70
      %s74 = sphi 0, %s73
      %s90 = sphi 0, %s74
      %s94 = sphi 0, %s94
      %s96 = sphi 0, %s94
      %s97 = sphi 0, %s96
      %s111 = sphi 0, %s97
      %s115 = sphi 0, %s115
      %s117 = sphi 0, %s115
      %s118 = sphi 0, %s117
      %s132 = sphi 0, %s118
      %s136 = sphi 0, %s136
      %s138 = sphi 0, %s136
      %s139 = sphi 0, %s138
      %s153 = sphi 0, %s139
      %s157 = sphi 0, %s157
      %s159 = sphi 0, %s157
      %s160 = sphi 0, %s159
      %s174 = sphi 0, %s160
      %s178 = sphi 0, %s178
      %s180 = sphi 0, %s178
      %s181 = sphi 0, %s180
      %s195 = sphi 0, %s181
      %s199 = sphi 0, %s199
      %s201 = sphi 0, %s199
      %s202 = sphi 0, %s201
      %s216 = sphi 0, %s202
      %s224 = sphi 0, %s226
      %s227 = sphi 0, %s224
      %s228 = sphi 0, %s227
      %s244 = sphi 0, %s228
    $region4: #{tpu_custom_call.1} parent=1 // loop_header_branch
      %25 = sbr.rel (%p23) target = $region8
    $region5: #{tpu_custom_call.1} parent=1 // loop_body
      %s27 = ssub.s32 %s22, 1
      %s28 = ssub.s32 %s22, 2
      %s35 = sadd.s32 1, %s30
      %p36 = scmp.ge.s32.totalorder %s35, 1
      %s37 = scalar_select %p36, 0, %s35
      %s38 = sadd.s32 1, %s29
      %s39 = scalar_select %p36, %s38, %s29
      %p40 = scmp.ge.s32.totalorder %s39, 2
      %s41 = scalar_select %p40, 0, %s39
      %s42 = ssub.s32 %s29, %s41
      %p43 = scmp.eq.s32.totalorder %s42, 0
      %s45 = sadd.s32 %s44, 1
      %s46 = scalar_select %p43, %s44, %s45
      %p49 = pneg %p43
      %p50 = scmp.eq.s32.totalorder %s22, 1
      %p51 = por %p49, %p50
      %p52 = scmp.ne.s32.totalorder %s44, %s47
      %p53 = scmp.eq.s32.totalorder %s22, 0
      %p54 = por %p52, %p53
      %p55 = scmp.ne.s32.totalorder %s44, %s47
      %p56 = scmp.eq.s32.totalorder %s27, 1
      %p57 = por %p55, %p56
      %p58 = scmp.ne.s32.totalorder %s47, %s48
      %p59 = scmp.eq.s32.totalorder %s27, 0
      %p60 = por %p58, %p59
      %p61 = scmp.ne.s32.totalorder %s47, %s48
      %p62 = scmp.eq.s32.totalorder %s28, 1
      %p63 = por %p61, %p62
      %p65 = scmp.ne.s32.totalorder %s48, %s64
      %p66 = scmp.eq.s32.totalorder %s28, 0
      %p67 = por %p65, %p66
      %s68 = ssub.s32 %s30, %s37
      %p69 = scmp.eq.s32.totalorder %s68, 0
      %s71 = sadd.s32 %s70, 1
      %s72 = scalar_select %p69, %s70, %s71
      %p75 = pneg %p69
      %p76 = scmp.eq.s32.totalorder %s22, 1
      %p77 = por %p75, %p76
      %p78 = scmp.ne.s32.totalorder %s70, %s73
      %p79 = scmp.eq.s32.totalorder %s22, 0
      %p80 = por %p78, %p79
      %p81 = scmp.ne.s32.totalorder %s70, %s73
      %p82 = scmp.eq.s32.totalorder %s27, 1
      %p83 = por %p81, %p82
      %p84 = scmp.ne.s32.totalorder %s73, %s74
      %p85 = scmp.eq.s32.totalorder %s27, 0
      %p86 = por %p84, %p85
      %p87 = scmp.ne.s32.totalorder %s73, %s74
      %p88 = scmp.eq.s32.totalorder %s28, 1
      %p89 = por %p87, %p88
      %p91 = scmp.ne.s32.totalorder %s74, %s90
      %p92 = scmp.eq.s32.totalorder %s28, 0
      %p93 = por %p91, %p92
      %s95 = sadd.s32 %s94, 1
      %p98 = scmp.eq.s32.totalorder %s22, 1
      %p99 = scmp.ne.s32.totalorder %s94, %s96
      %p100 = scmp.eq.s32.totalorder %s22, 0
      %p101 = por %p99, %p100
      %p102 = scmp.ne.s32.totalorder %s94, %s96
      %p103 = scmp.eq.s32.totalorder %s27, 1
      %p104 = por %p102, %p103
      %p105 = scmp.ne.s32.totalorder %s96, %s97
      %p106 = scmp.eq.s32.totalorder %s27, 0
      %p107 = por %p105, %p106
      %p108 = scmp.ne.s32.totalorder %s96, %s97
      %p109 = scmp.eq.s32.totalorder %s28, 1
      %p110 = por %p108, %p109
      %p112 = scmp.ne.s32.totalorder %s97, %s111
      %p113 = scmp.eq.s32.totalorder %s28, 0
      %p114 = por %p112, %p113
      %s116 = sadd.s32 %s115, 1
      %p119 = scmp.eq.s32.totalorder %s22, 1
      %p120 = scmp.ne.s32.totalorder %s115, %s117
      %p121 = scmp.eq.s32.totalorder %s22, 0
      %p122 = por %p120, %p121
      %p123 = scmp.ne.s32.totalorder %s115, %s117
      %p124 = scmp.eq.s32.totalorder %s27, 1
      %p125 = por %p123, %p124
      %p126 = scmp.ne.s32.totalorder %s117, %s118
      %p127 = scmp.eq.s32.totalorder %s27, 0
      %p128 = por %p126, %p127
      %p129 = scmp.ne.s32.totalorder %s117, %s118
      %p130 = scmp.eq.s32.totalorder %s28, 1
      %p131 = por %p129, %p130
      %p133 = scmp.ne.s32.totalorder %s118, %s132
      %p134 = scmp.eq.s32.totalorder %s28, 0
      %p135 = por %p133, %p134
      %s137 = sadd.s32 %s136, 1
      %p140 = scmp.eq.s32.totalorder %s22, 1
      %p141 = scmp.ne.s32.totalorder %s136, %s138
      %p142 = scmp.eq.s32.totalorder %s22, 0
      %p143 = por %p141, %p142
      %p144 = scmp.ne.s32.totalorder %s136, %s138
      %p145 = scmp.eq.s32.totalorder %s27, 1
      %p146 = por %p144, %p145
      %p147 = scmp.ne.s32.totalorder %s138, %s139
      %p148 = scmp.eq.s32.totalorder %s27, 0
      %p149 = por %p147, %p148
      %p150 = scmp.ne.s32.totalorder %s138, %s139
      %p151 = scmp.eq.s32.totalorder %s28, 1
      %p152 = por %p150, %p151
      %p154 = scmp.ne.s32.totalorder %s139, %s153
      %p155 = scmp.eq.s32.totalorder %s28, 0
      %p156 = por %p154, %p155
      %s158 = sadd.s32 %s157, 1
      %p161 = scmp.eq.s32.totalorder %s22, 1
      %p162 = scmp.ne.s32.totalorder %s157, %s159
      %p163 = scmp.eq.s32.totalorder %s22, 0
      %p164 = por %p162, %p163
      %p165 = scmp.ne.s32.totalorder %s157, %s159
      %p166 = scmp.eq.s32.totalorder %s27, 1
      %p167 = por %p165, %p166
      %p168 = scmp.ne.s32.totalorder %s159, %s160
      %p169 = scmp.eq.s32.totalorder %s27, 0
      %p170 = por %p168, %p169
      %p171 = scmp.ne.s32.totalorder %s159, %s160
      %p172 = scmp.eq.s32.totalorder %s28, 1
      %p173 = por %p171, %p172
      %p175 = scmp.ne.s32.totalorder %s160, %s174
      %p176 = scmp.eq.s32.totalorder %s28, 0
      %p177 = por %p175, %p176
      %s179 = sadd.s32 %s178, 1
      %p182 = scmp.eq.s32.totalorder %s22, 1
      %p183 = scmp.ne.s32.totalorder %s178, %s180
      %p184 = scmp.eq.s32.totalorder %s22, 0
      %p185 = por %p183, %p184
      %p186 = scmp.ne.s32.totalorder %s178, %s180
      %p187 = scmp.eq.s32.totalorder %s27, 1
      %p188 = por %p186, %p187
      %p189 = scmp.ne.s32.totalorder %s180, %s181
      %p190 = scmp.eq.s32.totalorder %s27, 0
      %p191 = por %p189, %p190
      %p192 = scmp.ne.s32.totalorder %s180, %s181
      %p193 = scmp.eq.s32.totalorder %s28, 1
      %p194 = por %p192, %p193
      %p196 = scmp.ne.s32.totalorder %s181, %s195
      %p197 = scmp.eq.s32.totalorder %s28, 0
      %p198 = por %p196, %p197
      %s200 = sadd.s32 %s199, 1
      %p203 = scmp.eq.s32.totalorder %s22, 1
      %p204 = scmp.ne.s32.totalorder %s199, %s201
      %p205 = scmp.eq.s32.totalorder %s22, 0
      %p206 = por %p204, %p205
      %p207 = scmp.ne.s32.totalorder %s199, %s201
      %p208 = scmp.eq.s32.totalorder %s27, 1
      %p209 = por %p207, %p208
      %p210 = scmp.ne.s32.totalorder %s201, %s202
      %p211 = scmp.eq.s32.totalorder %s27, 0
      %p212 = por %p210, %p211
      %p213 = scmp.ne.s32.totalorder %s201, %s202
      %p214 = scmp.eq.s32.totalorder %s28, 1
      %p215 = por %p213, %p214
      %p217 = scmp.ne.s32.totalorder %s202, %s216
      %p218 = scmp.eq.s32.totalorder %s28, 0
      %p219 = por %p217, %p218
      %s220 = ssub.s32 %s29, %s41
      %s221 = ssub.s32 %s30, %s37
      %s222 = sor.u32 %s220, %s221
      %p223 = scmp.eq.s32.totalorder %s222, 0
      %s225 = sadd.s32 %s224, 1
      %s226 = scalar_select %p223, %s224, %s225
      %p229 = pneg %p223
      %p230 = scmp.eq.s32.totalorder %s22, 1
      %p231 = por %p229, %p230
      %p232 = scmp.ne.s32.totalorder %s224, %s227
      %p233 = scmp.eq.s32.totalorder %s22, 0
      %p234 = por %p232, %p233
      %p235 = scmp.ne.s32.totalorder %s224, %s227
      %p236 = scmp.eq.s32.totalorder %s27, 1
      %p237 = por %p235, %p236
      %p238 = scmp.ne.s32.totalorder %s227, %s228
      %p239 = scmp.eq.s32.totalorder %s27, 0
      %p240 = por %p238, %p239
      %p241 = scmp.ne.s32.totalorder %s227, %s228
      %p242 = scmp.eq.s32.totalorder %s28, 1
      %p243 = por %p241, %p242
      %p245 = scmp.ne.s32.totalorder %s228, %s244
      %p246 = scmp.eq.s32.totalorder %s28, 0
      %p247 = por %p245, %p246
      %p248 = scmp.le.s32.totalorder 1, %s22
      %p249 = scmp.lt.s32.totalorder %s22, 3
      %p250 = pnand %p248, %p249
      %p251 = pneg %p250
      // Predicated region
      $region9: #{tpu_custom_call.1} parent=5 // pred_check
        _
      $region10: #{tpu_custom_call.1} parent=5 // pred_check_branch
        %253 = sbr.rel (%p250) target = $region12
      $region11: #{tpu_custom_call.1} parent=5 // pred_region
        %s254 = ssub.s32 %s22, 1
        // Predicated region
        $region13: #{tpu_custom_call.1} parent=11 // pred_check
          %p255 = pneg %p86
        $region14: #{tpu_custom_call.1} parent=11 // pred_check_branch
          %257 = sbr.rel (%p255) target = $region16
        $region15: #{tpu_custom_call.1} parent=11 // pred_region
          %s259 = ssub.s32 64, 64
          %260 = vsyncadd [#allocation7], %s259
          %s261 = smul.addr %s32, 64
          %s262 = scalar_lea.hbm %s1, %s261
          %s264 = sshll.u32 [#allocation6], 4
          %s265 = int_to_ptr.vmem [resolvable:$true] %s264
          %267 = dma.hbm_to_vmem [thread:$0]  %s262, 64, %s265, [#allocation7]
        $region16: #{tpu_custom_call.1} parent=11 // pred_fallthru
          _
        // Predicated region
        $region17: #{tpu_custom_call.1} parent=11 // pred_check
          %p268 = pneg %p107
        $region18: #{tpu_custom_call.1} parent=11 // pred_check_branch
          %270 = sbr.rel (%p268) target = $region20
        $region19: #{tpu_custom_call.1} parent=11 // pred_region
          %s272 = ssub.s32 1024, 1024
          %273 = vsyncadd [#allocation7], %s272
          %s274 = sshll.u32 [#allocation8], 4
          %s275 = int_to_ptr.vmem [resolvable:$true] %s274
          %280 = dma.hbm_to_vmem [thread:$0]  %s2, 1024, %s275, [#allocation7], 64, 64, 4
        $region20: #{tpu_custom_call.1} parent=11 // pred_fallthru
          _
        // Predicated region
        $region21: #{tpu_custom_call.1} parent=11 // pred_check
          %p281 = pneg %p128
        $region22: #{tpu_custom_call.1} parent=11 // pred_check_branch
          %283 = sbr.rel (%p281) target = $region24
        $region23: #{tpu_custom_call.1} parent=11 // pred_region
          _
        $region24: #{tpu_custom_call.1} parent=11 // pred_fallthru
          _
        // Predicated region
        $region25: #{tpu_custom_call.1} parent=11 // pred_check
          %p284 = pneg %p149
        $region26: #{tpu_custom_call.1} parent=11 // pred_check_branch
          %286 = sbr.rel (%p284) target = $region28
        $region27: #{tpu_custom_call.1} parent=11 // pred_region
          %s288 = ssub.s32 2048, 2048
          %289 = vsyncadd [#allocation10], %s288
          %s290 = sshll.u32 [#allocation9], 4
          %s291 = int_to_ptr.vmem [resolvable:$true] %s290
          %296 = dma.hbm_to_vmem [thread:$0]  %s4, 2048, %s291, [#allocation10], 128, 128, 8
        $region28: #{tpu_custom_call.1} parent=11 // pred_fallthru
          _
        // Predicated region
        $region29: #{tpu_custom_call.1} parent=11 // pred_check
          %p297 = pneg %p170
        $region30: #{tpu_custom_call.1} parent=11 // pred_check_branch
          %299 = sbr.rel (%p297) target = $region32
        $region31: #{tpu_custom_call.1} parent=11 // pred_region
          _
        $region32: #{tpu_custom_call.1} parent=11 // pred_fallthru
          _
        // Predicated region
        $region33: #{tpu_custom_call.1} parent=11 // pred_check
          %p300 = pneg %p191
        $region34: #{tpu_custom_call.1} parent=11 // pred_check_branch
          %302 = sbr.rel (%p300) target = $region36
        $region35: #{tpu_custom_call.1} parent=11 // pred_region
          %s304 = ssub.s32 1024, 1024
          %305 = vsyncadd [#allocation10], %s304
          %s306 = sshll.u32 [#allocation11], 4
          %s307 = int_to_ptr.vmem [resolvable:$true] %s306
          %312 = dma.hbm_to_vmem [thread:$0]  %s6, 1024, %s307, [#allocation10], 64, 64, 4
        $region36: #{tpu_custom_call.1} parent=11 // pred_fallthru
          _
        // Predicated region
        $region37: #{tpu_custom_call.1} parent=11 // pred_check
          %p313 = pneg %p212
        $region38: #{tpu_custom_call.1} parent=11 // pred_check_branch
          %315 = sbr.rel (%p313) target = $region40
        $region39: #{tpu_custom_call.1} parent=11 // pred_region
          _
        $region40: #{tpu_custom_call.1} parent=11 // pred_fallthru
          _
      $region12: #{tpu_custom_call.1} parent=5 // pred_fallthru
        _
      %p316 = scmp.lt.s32.totalorder %s22, 2
      // Predicated region
      $region41: #{tpu_custom_call.1} parent=5 // pred_check
        %p317 = pneg %p316
      $region42: #{tpu_custom_call.1} parent=5 // pred_check_branch
        %319 = sbr.rel (%p317) target = $region44
      $region43: #{tpu_custom_call.1} parent=5 // pred_region
        // Predicated region
        $region45: #{tpu_custom_call.1} parent=43 // pred_check
          %p320 = pneg %p54
        $region46: #{tpu_custom_call.1} parent=43 // pred_check_branch
          %322 = sbr.rel (%p320) target = $region48
        $region47: #{tpu_custom_call.1} parent=43 // pred_region
          %s323 = sand.u32 %s44, 1
          %s324 = scalar_lea.sflag [#allocation4], %s323
          %s325 = sand.u32 %s44, 1
          %s326 = smul.addr %s325, 4
          %s327 = scalar_lea.vmem [#allocation3], %s326
          %s329 = ssub.s32 64, 64
          %330 = vsyncadd %s324, %s329
          %s331 = smul.addr %s29, 64
          %s332 = scalar_lea.hbm %s0, %s331
          %s334 = sshll.u32 %s327, 4
          %s335 = int_to_ptr.vmem [resolvable:$true] %s334
          %337 = dma.hbm_to_vmem [thread:$0]  %s332, 64, %s335, %s324
        $region48: #{tpu_custom_call.1} parent=43 // pred_fallthru
          _
      $region44: #{tpu_custom_call.1} parent=5 // pred_fallthru
        _
      %p338 = scmp.le.s32.totalorder 1, %s22
      %p339 = scmp.lt.s32.totalorder %s22, 3
      %p340 = pnand %p338, %p339
      %p341 = pneg %p340
      // Predicated region
      $region49: #{tpu_custom_call.1} parent=5 // pred_check
        _
      $region50: #{tpu_custom_call.1} parent=5 // pred_check_branch
        %343 = sbr.rel (%p340) target = $region52
      $region51: #{tpu_custom_call.1} parent=5 // pred_region
        %s344 = ssub.s32 %s22, 1
        %s345 = sand.u32 %s47, 1
        %s346 = scalar_lea.sflag [#allocation4], %s345
        %s347 = sand.u32 %s47, 1
        %s348 = smul.addr %s347, 4
        %s349 = scalar_lea.vmem [#allocation3], %s348
        // Predicated region
        $region53: #{tpu_custom_call.1} parent=51 // pred_check
          %p350 = pneg %p60
        $region54: #{tpu_custom_call.1} parent=51 // pred_check_branch
          %352 = sbr.rel (%p350) target = $region56
        $region55: #{tpu_custom_call.1} parent=51 // pred_region
          %353 = dma.done %s346, 64
        $region56: #{tpu_custom_call.1} parent=51 // pred_fallthru
          _
        // Predicated region
        $region57: #{tpu_custom_call.1} parent=51 // pred_check
          %p354 = pneg %p86
        $region58: #{tpu_custom_call.1} parent=51 // pred_check_branch
          %356 = sbr.rel (%p354) target = $region60
        $region59: #{tpu_custom_call.1} parent=51 // pred_region
          %357 = dma.done [#allocation7], 64
        $region60: #{tpu_custom_call.1} parent=51 // pred_fallthru
          _
        // Predicated region
        $region61: #{tpu_custom_call.1} parent=51 // pred_check
          %p358 = pneg %p107
        $region62: #{tpu_custom_call.1} parent=51 // pred_check_branch
          %360 = sbr.rel (%p358) target = $region64
        $region63: #{tpu_custom_call.1} parent=51 // pred_region
          %361 = dma.done [#allocation7], 1024
        $region64: #{tpu_custom_call.1} parent=51 // pred_fallthru
          _
        // Predicated region
        $region65: #{tpu_custom_call.1} parent=51 // pred_check
          %p362 = pneg %p149
        $region66: #{tpu_custom_call.1} parent=51 // pred_check_branch
          %364 = sbr.rel (%p362) target = $region68
        $region67: #{tpu_custom_call.1} parent=51 // pred_region
          %365 = dma.done [#allocation10], 2048
        $region68: #{tpu_custom_call.1} parent=51 // pred_fallthru
          _
        // Predicated region
        $region69: #{tpu_custom_call.1} parent=51 // pred_check
          %p366 = pneg %p191
        $region70: #{tpu_custom_call.1} parent=51 // pred_check_branch
          %368 = sbr.rel (%p366) target = $region72
        $region71: #{tpu_custom_call.1} parent=51 // pred_region
          %369 = dma.done [#allocation10], 1024
        $region72: #{tpu_custom_call.1} parent=51 // pred_fallthru
          _
        %s370 = sand.u32 %s47, 1
        %s371 = scalar_lea.sflag [#allocation4], %s370
        %s372 = sand.u32 %s47, 1
        %s373 = smul.addr %s372, 4
        %s374 = scalar_lea.vmem [#allocation3], %s373
        %p375 = pneg %p60
        %p376 = pneg %p57
        %p377 = pneg %p86
        %p378 = pneg %p83
        %p379 = pneg %p107
        %p380 = pneg %p104
        %p381 = pneg %p128
        %p382 = pneg %p125
        %p383 = pneg %p149
        %p384 = pneg %p146
        %p385 = pneg %p170
        %p386 = pneg %p167
        %p387 = pneg %p191
        %p388 = pneg %p188
        %p389 = pneg %p212
        %p390 = pneg %p209
        %p391 = pneg %p240
        %p392 = pneg %p237
        %s393 = sand.u32 %s227, 1
        %s394 = scalar_lea.sflag [#allocation5], %s393
        %s395 = sand.u32 %s227, 1
        %s396 = smul.addr %s395, 8
        %s397 = scalar_lea.vmem [#allocation12], %s396
        %p399 = scmp.eq.s32.totalorder %s32, 0
        // Predicated region
        $region73: #{tpu_custom_call.1} parent=51 // pred_check
          %p400 = pneg %p399
        $region74: #{tpu_custom_call.1} parent=51 // pred_check_branch
          %402 = sbr.rel (%p400) target = $region76
        $region75: #{tpu_custom_call.1} parent=51 // pred_region
          %v403 = vld [vmem:[%s349] sm:$0xf]
          %v404 = vld [vmem:[#allocation9] sm:$0xff]
          %v405 = vld [vmem:[#allocation9 + $0x8] sm:$0xff]
          %v406 = vld [vmem:[#allocation9 + $0x10] sm:$0xff]
          %v407 = vld [vmem:[#allocation9 + $0x18] sm:$0xff]
          %v408 = vld [vmem:[#allocation9 + $0x20] sm:$0xff]
          %v409 = vld [vmem:[#allocation9 + $0x28] sm:$0xff]
          %v410 = vld [vmem:[#allocation9 + $0x30] sm:$0xff]
          %v411 = vld [vmem:[#allocation9 + $0x38] sm:$0xff]
          %v412 = vld [vmem:[#allocation9 + $0x40] sm:$0xff]
          %v413 = vld [vmem:[#allocation9 + $0x48] sm:$0xff]
          %v414 = vld [vmem:[#allocation9 + $0x50] sm:$0xff]
          %v415 = vld [vmem:[#allocation9 + $0x58] sm:$0xff]
          %v416 = vld [vmem:[#allocation9 + $0x60] sm:$0xff]
          %v417 = vld [vmem:[#allocation9 + $0x68] sm:$0xff]
          %v418 = vld [vmem:[#allocation9 + $0x70] sm:$0xff]
          %v419 = vld [vmem:[#allocation9 + $0x78] sm:$0xff]
          %v420 = vld [vmem:[%s5] sm:$0x3]
          %v422 = vlaneseq
          %v423 = vshrl.u32 %v422, 7
          %v424 = vsub.s32 0, %v423
          %v425 = vrot.slane %v420, %v424
          %v426 = vlaneseq
          %v427 = vshrl.u32 %v426, 7
          %v428 = vsub.s32 1, %v427
          %v429 = vrot.slane %v420, %v428
          %v448 = vunpack.c.l.b16 %v404
          %v449 = vunpack.c.h.b16 %v404
          %v450 = vunpack.c.l.b16 %v405
          %v451 = vunpack.c.h.b16 %v405
          %v452 = vunpack.c.l.b16 %v406
          %v453 = vunpack.c.h.b16 %v406
          %v454 = vunpack.c.l.b16 %v407
          %v455 = vunpack.c.h.b16 %v407
          %v456 = vunpack.c.l.b16 %v408
          %v457 = vunpack.c.h.b16 %v408
          %v458 = vunpack.c.l.b16 %v409
          %v459 = vunpack.c.h.b16 %v409
          %v460 = vunpack.c.l.b16 %v410
          %v461 = vunpack.c.h.b16 %v410
          %v462 = vunpack.c.l.b16 %v411
          %v463 = vunpack.c.h.b16 %v411
          %v464 = vunpack.c.l.b16 %v412
          %v465 = vunpack.c.h.b16 %v412
          %v466 = vunpack.c.l.b16 %v413
          %v467 = vunpack.c.h.b16 %v413
          %v468 = vunpack.c.l.b16 %v414
          %v469 = vunpack.c.h.b16 %v414
          %v470 = vunpack.c.l.b16 %v415
          %v471 = vunpack.c.h.b16 %v415
          %v472 = vunpack.c.l.b16 %v416
          %v473 = vunpack.c.h.b16 %v416
          %v474 = vunpack.c.l.b16 %v417
          %v475 = vunpack.c.h.b16 %v417
          %v476 = vunpack.c.l.b16 %v418
          %v477 = vunpack.c.h.b16 %v418
          %v478 = vunpack.c.l.b16 %v419
          %v479 = vunpack.c.h.b16 %v419
          %v480 = vpack.c.b16 %v450, %v448
          %v481 = vpack.c.b16 %v451, %v449
          %v482 = vpack.c.b16 %v454, %v452
          %v483 = vpack.c.b16 %v455, %v453
          %v484 = vpack.c.b16 %v458, %v456
          %v485 = vpack.c.b16 %v459, %v457
          %v486 = vpack.c.b16 %v462, %v460
          %v487 = vpack.c.b16 %v463, %v461
          %v488 = vpack.c.b16 %v466, %v464
          %v489 = vpack.c.b16 %v467, %v465
          %v490 = vpack.c.b16 %v470, %v468
          %v491 = vpack.c.b16 %v471, %v469
          %v492 = vpack.c.b16 %v474, %v472
          %v493 = vpack.c.b16 %v475, %v473
          %v494 = vpack.c.b16 %v478, %v476
          %v495 = vpack.c.b16 %v479, %v477
          %512 = vmatprep.subr.bf16.mxu0 %v495
          %513 = vmatpush1.bf16.msra.mxu0 %v494
          %514 = vmatprep.subr.bf16.mxu0 %v493
          %515 = vmatpush1.bf16.msra.mxu0 %v492
          %516 = vmatprep.subr.bf16.mxu0 %v491
          %517 = vmatpush1.bf16.msra.mxu0 %v490
          %518 = vmatprep.subr.bf16.mxu0 %v489
          %519 = vmatpush1.bf16.msra.mxu0 %v488
          %520 = vmatprep.subr.bf16.mxu0 %v487
          %521 = vmatpush1.bf16.msra.mxu0 %v486
          %522 = vmatprep.subr.bf16.mxu0 %v485
          %523 = vmatpush1.bf16.msra.mxu0 %v484
          %524 = vmatprep.subr.bf16.mxu0 %v483
          %525 = vmatpush1.bf16.msra.mxu0 %v482
          %526 = vmatprep.subr.bf16.mxu0 %v481
          %527 = vmatpush1.bf16.msra.mxu0 %v480
          %528 = vmatprep.subr.bf16.mxu0 0
          %529 = vmatpush2.bf16.msra.mxu0 0
          %530 = vmatprep.subr.bf16.mxu0 0
          %531 = vmatpush2.bf16.msra.mxu0 0
          %532 = vmatprep.subr.bf16.mxu0 0
          %533 = vmatpush2.bf16.msra.mxu0 0
          %534 = vmatprep.subr.bf16.mxu0 0
          %535 = vmatpush2.bf16.msra.mxu0 0
          %536 = vmatprep.subr.bf16.mxu0 0
          %537 = vmatpush2.bf16.msra.mxu0 0
          %538 = vmatprep.subr.bf16.mxu0 0
          %539 = vmatpush2.bf16.msra.mxu0 0
          %540 = vmatprep.subr.bf16.mxu0 0
          %541 = vmatpush2.bf16.msra.mxu0 0
          %542 = vmatprep.subr.bf16.mxu0 0
          %543 = vmatpush2.bf16.msra.mxu0 0
          %544 = vmatprep.mubr.bf16.mxu0 0
          %545 = vmatmul.mubr.bf16.gmra.mxu0 %v403
          %v546 = vpop.f32.mrf.mxu0
          %v547 = vadd.f32 %v425, %v546
          %v548 = vpop.f32.mrf.mxu0
          %v549 = vadd.f32 %v429, %v548
          %v550 = vpop.f32.mrf.mxu0
          %v551 = vpop.f32.mrf.mxu0
          %552 = vdwg.mxu0
          %v553 = vmul.f32 %v547, 1.442695
          %v554 = vpow.pop %v553
          %v555 = vmul.f32 %v554, %v549
          %v556 = vpack.c.bf16 %v555, %v555
          %s557 = smul.u32 0, 2
          %s558 = smul.addr %s557, 4
          %s559 = scalar_lea.vmem [#allocation2], %s558
          %560 = vst [vmem:[%s559] sm:$0xf] %v556
          %v561 = vpack.c.bf16 %v554, %v554
          %562 = vst [vmem:[%s559 + $0x4] sm:$0xf] %v561
        $region76: #{tpu_custom_call.1} parent=51 // pred_fallthru
          _
        %s563 = smul.u32 %s32, 8
        %s564 = sshra.s32 %s563, 3
        %s565 = sand.u32 %s563, 7
        %s566 = smul.addr %s564, 4
        %s567 = scalar_lea.vmem %s349, %s566 [#allocation3]
        %v568 = vld [vmem:[%s567] sm:$0xf]
        %v569 = vld [vmem:[#allocation8] sm:$0xf]
        %v570 = vld [vmem:[#allocation8 + $0x4] sm:$0xf]
        %v571 = vld [vmem:[#allocation8 + $0x8] sm:$0xf]
        %v572 = vld [vmem:[#allocation8 + $0xc] sm:$0xf]
        %v573 = vld [vmem:[#allocation8 + $0x10] sm:$0xf]
        %v574 = vld [vmem:[#allocation8 + $0x14] sm:$0xf]
        %v575 = vld [vmem:[#allocation8 + $0x18] sm:$0xf]
        %v576 = vld [vmem:[#allocation8 + $0x1c] sm:$0xf]
        %v577 = vld [vmem:[#allocation8 + $0x20] sm:$0xf]
        %v578 = vld [vmem:[#allocation8 + $0x24] sm:$0xf]
        %v579 = vld [vmem:[#allocation8 + $0x28] sm:$0xf]
        %v580 = vld [vmem:[#allocation8 + $0x2c] sm:$0xf]
        %v581 = vld [vmem:[#allocation8 + $0x30] sm:$0xf]
        %v582 = vld [vmem:[#allocation8 + $0x34] sm:$0xf]
        %v583 = vld [vmem:[#allocation8 + $0x38] sm:$0xf]
        %v584 = vld [vmem:[#allocation8 + $0x3c] sm:$0xf]
        %v585 = vld [vmem:[%s3] sm:$0x1]
        %v587 = vlaneseq
        %v588 = vshrl.u32 %v587, 7
        %v589 = vsub.s32 0, %v588
        %v590 = vrot.slane %v585, %v589
        %v608 = vunpack.c.l.b16 %v569
        %v609 = vunpack.c.l.b16 %v570
        %v610 = vunpack.c.l.b16 %v571
        %v611 = vunpack.c.l.b16 %v572
        %v612 = vunpack.c.l.b16 %v573
        %v613 = vunpack.c.l.b16 %v574
        %v614 = vunpack.c.l.b16 %v575
        %v615 = vunpack.c.l.b16 %v576
        %v616 = vunpack.c.l.b16 %v577
        %v617 = vunpack.c.l.b16 %v578
        %v618 = vunpack.c.l.b16 %v579
        %v619 = vunpack.c.l.b16 %v580
        %v620 = vunpack.c.l.b16 %v581
        %v621 = vunpack.c.l.b16 %v582
        %v622 = vunpack.c.l.b16 %v583
        %v623 = vunpack.c.l.b16 %v584
        %v624 = vpack.c.b16 %v609, %v608
        %v625 = vpack.c.b16 %v611, %v610
        %v626 = vpack.c.b16 %v613, %v612
        %v627 = vpack.c.b16 %v615, %v614
        %v628 = vpack.c.b16 %v617, %v616
        %v629 = vpack.c.b16 %v619, %v618
        %v630 = vpack.c.b16 %v621, %v620
        %v631 = vpack.c.b16 %v623, %v622
        %640 = vmatprep.subr.bf16.mxu0 0
        %641 = vmatpush1.bf16.msra.mxu0 %v631
        %642 = vmatprep.subr.bf16.mxu0 0
        %643 = vmatpush1.bf16.msra.mxu0 %v630
        %644 = vmatprep.subr.bf16.mxu0 0
        %645 = vmatpush1.bf16.msra.mxu0 %v629
        %646 = vmatprep.subr.bf16.mxu0 0
        %647 = vmatpush1.bf16.msra.mxu0 %v628
        %648 = vmatprep.subr.bf16.mxu0 0
        %649 = vmatpush1.bf16.msra.mxu0 %v627
        %650 = vmatprep.subr.bf16.mxu0 0
        %651 = vmatpush1.bf16.msra.mxu0 %v626
        %652 = vmatprep.subr.bf16.mxu0 0
        %653 = vmatpush1.bf16.msra.mxu0 %v625
        %654 = vmatprep.subr.bf16.mxu0 0
        %655 = vmatpush1.bf16.msra.mxu0 %v624
        %656 = vmatprep.subr.bf16.mxu0 0
        %657 = vmatpush2.bf16.msra.mxu0 0
        %658 = vmatprep.subr.bf16.mxu0 0
        %659 = vmatpush2.bf16.msra.mxu0 0
        %660 = vmatprep.subr.bf16.mxu0 0
        %661 = vmatpush2.bf16.msra.mxu0 0
        %662 = vmatprep.subr.bf16.mxu0 0
        %663 = vmatpush2.bf16.msra.mxu0 0
        %664 = vmatprep.subr.bf16.mxu0 0
        %665 = vmatpush2.bf16.msra.mxu0 0
        %666 = vmatprep.subr.bf16.mxu0 0
        %667 = vmatpush2.bf16.msra.mxu0 0
        %668 = vmatprep.subr.bf16.mxu0 0
        %669 = vmatpush2.bf16.msra.mxu0 0
        %670 = vmatprep.subr.bf16.mxu0 0
        %671 = vmatpush2.bf16.msra.mxu0 0
        %672 = vmatprep.mubr.bf16.mxu0 0
        %673 = vmatmul.mubr.bf16.gmra.mxu0 %v568
        %v674 = vpop.f32.mrf.mxu0
        %v675 = vadd.f32 %v590, %v674
        %v676 = vpop.f32.mrf.mxu0
        %v677 = vpop.f32.mrf.mxu0
        %v678 = vpop.f32.mrf.mxu0
        %679 = vdwg.mxu0
        %v680 = vxor.u32 %v675, 2147483648
        %v681 = vmul.f32 %v680, 1.442695
        %v682 = vpow.pop %v681
        %v683 = vadd.f32 %v682, 1.0
        %v684 = vrcp.pop %v683
        %v685 = vmul.f32 1.0, %v684
        %v686 = vld [vmem:[#allocation6] sm:$0xf]
        %v687 = vld [vmem:[#allocation2] sm:$0xff]
        %v689 = vunpack.c.l.b16 %v687
        %v690 = vunpack.c.h.b16 %v687
        %v691 = vpack.c.b16 %v689, %v689
        %v692 = vpack.c.b16 %v690, %v690
        %vm693 = vcmask 64512
        %v695 = vsel %vm693, %v686, 0
        %vm697 = vcmask 1043456
        %v699 = vsel %vm697, %v691, 0
        %v702 = vsel %vm697, %v692, 0
        %704 = vmatprep.subr.bf16.mxu0 0
        %705 = vmatpush1.bf16.msra.mxu0 0
        %706 = vmatprep.subr.bf16.mxu0 0
        %707 = vmatpush1.bf16.msra.mxu0 0
        %708 = vmatprep.subr.bf16.mxu0 0
        %709 = vmatpush1.bf16.msra.mxu0 0
        %710 = vmatprep.subr.bf16.mxu0 0
        %711 = vmatpush1.bf16.msra.mxu0 0
        %712 = vmatprep.subr.bf16.mxu0 0
        %713 = vmatpush1.bf16.msra.mxu0 0
        %714 = vmatprep.subr.bf16.mxu0 0
        %715 = vmatpush1.bf16.msra.mxu0 0
        %716 = vmatprep.subr.bf16.mxu0 0
        %717 = vmatpush1.bf16.msra.mxu0 0
        %718 = vmatprep.subr.bf16.mxu0 %v702
        %719 = vmatpush1.bf16.msra.mxu0 %v699
        %720 = vmatprep.subr.bf16.mxu0 0
        %721 = vmatpush2.bf16.msra.mxu0 0
        %722 = vmatprep.subr.bf16.mxu0 0
        %723 = vmatpush2.bf16.msra.mxu0 0
        %724 = vmatprep.subr.bf16.mxu0 0
        %725 = vmatpush2.bf16.msra.mxu0 0
        %726 = vmatprep.subr.bf16.mxu0 0
        %727 = vmatpush2.bf16.msra.mxu0 0
        %728 = vmatprep.subr.bf16.mxu0 0
        %729 = vmatpush2.bf16.msra.mxu0 0
        %730 = vmatprep.subr.bf16.mxu0 0
        %731 = vmatpush2.bf16.msra.mxu0 0
        %732 = vmatprep.subr.bf16.mxu0 0
        %733 = vmatpush2.bf16.msra.mxu0 0
        %734 = vmatprep.subr.bf16.mxu0 0
        %735 = vmatpush2.bf16.msra.mxu0 0
        %736 = vmatprep.mubr.bf16.mxu0 0
        %737 = vmatmul.mubr.bf16.gmra.mxu0 %v695
        %v738 = vpop.f32.mrf.mxu0
        %v739 = vadd.f32 0.0, %v738
        %v740 = vpop.f32.mrf.mxu0
        %v741 = vadd.f32 0.0, %v740
        %v742 = vpop.f32.mrf.mxu0
        %v743 = vpop.f32.mrf.mxu0
        %744 = vdwg.mxu0
        %v745 = vmul.f32 %v685, %v739
        %v746 = vrcp.pop %v741
        %v747 = vmul.f32 %v745, %v746
        %v748 = vpack.c.bf16 %v747, %v747
        %v749 = vld [vmem:[#allocation11] sm:$0xf]
        %v750 = vld [vmem:[#allocation11 + $0x4] sm:$0xf]
        %v751 = vld [vmem:[#allocation11 + $0x8] sm:$0xf]
        %v752 = vld [vmem:[#allocation11 + $0xc] sm:$0xf]
        %v753 = vld [vmem:[#allocation11 + $0x10] sm:$0xf]
        %v754 = vld [vmem:[#allocation11 + $0x14] sm:$0xf]
        %v755 = vld [vmem:[#allocation11 + $0x18] sm:$0xf]
        %v756 = vld [vmem:[#allocation11 + $0x1c] sm:$0xf]
        %v757 = vld [vmem:[#allocation11 + $0x20] sm:$0xf]
        %v758 = vld [vmem:[#allocation11 + $0x24] sm:$0xf]
        %v759 = vld [vmem:[#allocation11 + $0x28] sm:$0xf]
        %v760 = vld [vmem:[#allocation11 + $0x2c] sm:$0xf]
        %v761 = vld [vmem:[#allocation11 + $0x30] sm:$0xf]
        %v762 = vld [vmem:[#allocation11 + $0x34] sm:$0xf]
        %v763 = vld [vmem:[#allocation11 + $0x38] sm:$0xf]
        %v764 = vld [vmem:[#allocation11 + $0x3c] sm:$0xf]
        %v765 = vld [vmem:[%s7] sm:$0x1]
        %v767 = vlaneseq
        %v768 = vshrl.u32 %v767, 7
        %v769 = vsub.s32 0, %v768
        %v770 = vrot.slane %v765, %v769
        %v788 = vunpack.c.l.b16 %v749
        %v789 = vunpack.c.l.b16 %v750
        %v790 = vunpack.c.l.b16 %v751
        %v791 = vunpack.c.l.b16 %v752
        %v792 = vunpack.c.l.b16 %v753
        %v793 = vunpack.c.l.b16 %v754
        %v794 = vunpack.c.l.b16 %v755
        %v795 = vunpack.c.l.b16 %v756
        %v796 = vunpack.c.l.b16 %v757
        %v797 = vunpack.c.l.b16 %v758
        %v798 = vunpack.c.l.b16 %v759
        %v799 = vunpack.c.l.b16 %v760
        %v800 = vunpack.c.l.b16 %v761
        %v801 = vunpack.c.l.b16 %v762
        %v802 = vunpack.c.l.b16 %v763
        %v803 = vunpack.c.l.b16 %v764
        %v804 = vpack.c.b16 %v789, %v788
        %v805 = vpack.c.b16 %v791, %v790
        %v806 = vpack.c.b16 %v793, %v792
        %v807 = vpack.c.b16 %v795, %v794
        %v808 = vpack.c.b16 %v797, %v796
        %v809 = vpack.c.b16 %v799, %v798
        %v810 = vpack.c.b16 %v801, %v800
        %v811 = vpack.c.b16 %v803, %v802
        %820 = vmatprep.subr.bf16.mxu0 0
        %821 = vmatpush1.bf16.msra.mxu0 %v811
        %822 = vmatprep.subr.bf16.mxu0 0
        %823 = vmatpush1.bf16.msra.mxu0 %v810
        %824 = vmatprep.subr.bf16.mxu0 0
        %825 = vmatpush1.bf16.msra.mxu0 %v809
        %826 = vmatprep.subr.bf16.mxu0 0
        %827 = vmatpush1.bf16.msra.mxu0 %v808
        %828 = vmatprep.subr.bf16.mxu0 0
        %829 = vmatpush1.bf16.msra.mxu0 %v807
        %830 = vmatprep.subr.bf16.mxu0 0
        %831 = vmatpush1.bf16.msra.mxu0 %v806
        %832 = vmatprep.subr.bf16.mxu0 0
        %833 = vmatpush1.bf16.msra.mxu0 %v805
        %834 = vmatprep.subr.bf16.mxu0 0
        %835 = vmatpush1.bf16.msra.mxu0 %v804
        %836 = vmatprep.subr.bf16.mxu0 0
        %837 = vmatpush2.bf16.msra.mxu0 0
        %838 = vmatprep.subr.bf16.mxu0 0
        %839 = vmatpush2.bf16.msra.mxu0 0
        %840 = vmatprep.subr.bf16.mxu0 0
        %841 = vmatpush2.bf16.msra.mxu0 0
        %842 = vmatprep.subr.bf16.mxu0 0
        %843 = vmatpush2.bf16.msra.mxu0 0
        %844 = vmatprep.subr.bf16.mxu0 0
        %845 = vmatpush2.bf16.msra.mxu0 0
        %846 = vmatprep.subr.bf16.mxu0 0
        %847 = vmatpush2.bf16.msra.mxu0 0
        %848 = vmatprep.subr.bf16.mxu0 0
        %849 = vmatpush2.bf16.msra.mxu0 0
        %850 = vmatprep.subr.bf16.mxu0 0
        %851 = vmatpush2.bf16.msra.mxu0 0
        %852 = vmatprep.mubr.bf16.mxu0 0
        %853 = vmatmul.mubr.bf16.gmra.mxu0 %v748
        %v854 = vpop.f32.mrf.mxu0
        %v855 = vadd.f32 %v770, %v854
        %v856 = vpop.f32.mrf.mxu0
        %v857 = vpop.f32.mrf.mxu0
        %v858 = vpop.f32.mrf.mxu0
        %859 = vdwg.mxu0
        %860 = vst [vmem:[%s397] sm:$0xff] %v855
        %s861 = sand.u32 %s227, 1
        %s862 = scalar_lea.sflag [#allocation5], %s861
        %s863 = sand.u32 %s227, 1
        %s864 = smul.addr %s863, 8
        %s865 = scalar_lea.vmem [#allocation12], %s864
        // Predicated region
        $region77: #{tpu_custom_call.1} parent=51 // pred_check
          %p866 = pneg %p237
        $region78: #{tpu_custom_call.1} parent=51 // pred_check_branch
          %868 = sbr.rel (%p866) target = $region80
        $region79: #{tpu_custom_call.1} parent=51 // pred_region
          %s870 = ssub.s32 128, 128
          %871 = vsyncadd %s862, %s870
          %s872 = sadd.s32 %s32, %s31
          %s873 = smul.addr %s872, 128
          %s874 = scalar_lea.hbm %s8, %s873
          %s876 = sshll.u32 %s865, 4
          %s877 = int_to_ptr.vmem [resolvable:$true] %s876
          %879 = dma.vmem_to_hbm [thread:$0]  %s877, 128, %s874, %s862
        $region80: #{tpu_custom_call.1} parent=51 // pred_fallthru
          _
      $region52: #{tpu_custom_call.1} parent=5 // pred_fallthru
        _
      %p880 = scmp.le.s32.totalorder 2, %s22
      // Predicated region
      $region81: #{tpu_custom_call.1} parent=5 // pred_check
        %p881 = pneg %p880
      $region82: #{tpu_custom_call.1} parent=5 // pred_check_branch
        %883 = sbr.rel (%p881) target = $region84
      $region83: #{tpu_custom_call.1} parent=5 // pred_region
        %s884 = ssub.s32 %s22, 2
        // Predicated region
        $region85: #{tpu_custom_call.1} parent=83 // pred_check
          %p885 = pneg %p243
        $region86: #{tpu_custom_call.1} parent=83 // pred_check_branch
          %887 = sbr.rel (%p885) target = $region88
        $region87: #{tpu_custom_call.1} parent=83 // pred_region
          %s888 = sand.u32 %s228, 1
          %s889 = scalar_lea.sflag [#allocation5], %s888
          %s890 = sand.u32 %s228, 1
          %s891 = smul.addr %s890, 8
          %s892 = scalar_lea.vmem [#allocation12], %s891
          %893 = dma.done %s889, 128
        $region88: #{tpu_custom_call.1} parent=83 // pred_fallthru
          _
      $region84: #{tpu_custom_call.1} parent=5 // pred_fallthru
        _
    $region6: #{tpu_custom_call.1} parent=1 // loop_footer
      %s26 = sadd.s32 1, %s22
    $region7: #{tpu_custom_call.1} parent=1 // loop_footer_branch
      %21 = sbr.rel target = $region3
    $region8: #{tpu_custom_call.1} parent=1 // loop_exit
      _
    %894 = vsyncpa [#allocation4], 1
    %s895 = scalar_lea.sflag [#allocation4], 1
    %896 = vsyncpa %s895, 1
    %897 = vsyncpa [#allocation7], 1
    %898 = vsyncpa [#allocation10], 1
    %899 = vsyncpa [#allocation5], 1
    %s900 = scalar_lea.sflag [#allocation5], 1
    %901 = vsyncpa %s900, 1

</llo_original>
